<compile_context>
chip_gen: v7x
topology: tpu7x:2x2x1
jax: 0.10.0
libtpu: 0.0.40
codegen_flags: <defaults>
</compile_context>

<pallas_src>
import math

import numpy as np
import jax
import jax.numpy as jnp
from jax import lax
from jax.experimental import pallas as pl
from jax.experimental.pallas import tpu as pltpu

EPS = 1e-5  # LayerNorm epsilon (PyTorch default)


def _layernorm(y):
    """Channel LayerNorm (no affine), two-pass variance for numerical safety."""
    mean = jnp.mean(y, axis=-1, keepdims=True)
    d = y - mean
    var = jnp.mean(d * d, axis=-1, keepdims=True)
    return d * lax.rsqrt(var + EPS)


def _make_kernel(rows_blk, seq_len):
    def kernel(x_ref, w1_ref, vec_ref, w2_ref, wl_ref, bl_ref, o_ref):
        # Row position within its sequence (blocks always contain whole sequences), shared by
        # both conv layers so the boundary masks are built only once.
        t_idx = lax.broadcasted_iota(jnp.int32, (rows_blk, 1), 0) % seq_len
        first = t_idx == 0
        last = t_idx == seq_len - 1

        b1 = vec_ref[0:1, :]
        g1 = vec_ref[1:2, :]
        be1 = vec_ref[2:3, :]
        b2 = vec_ref[3:4, :]

        # ---- layer 1: pre-stacked 3-tap conv (single matmul) + ReLU + LayerNorm affine ----
        y = jnp.dot(x_ref[...], w1_ref[...], preferred_element_type=jnp.float32) + b1
        y = jnp.maximum(y, 0.0)
        h = _layernorm(y) * g1 + be1

        # ---- layer 2: k=3 "same" conv as three K=n_chans matmuls (no lane concat) ----------
        zero = jnp.zeros_like(h)
        h_prev = jnp.where(first, zero, jnp.roll(h, 1, axis=0))    # h[t-1], zero at t==0
        h_next = jnp.where(last, zero, jnp.roll(h, -1, axis=0))    # h[t+1], zero at t==T-1
        y2 = (jnp.dot(h_prev, w2_ref[0], preferred_element_type=jnp.float32)
              + jnp.dot(h, w2_ref[1], preferred_element_type=jnp.float32)
              + jnp.dot(h_next, w2_ref[2], preferred_element_type=jnp.float32)
              + b2)
        y2 = jnp.maximum(y2, 0.0)
        z = _layernorm(y2)          # LN2 gamma/beta are folded into the final linear

        # ---- final linear (LN2 affine folded in), lane-dense bf16 slab ----------------------
        out = jnp.dot(z, wl_ref[...], preferred_element_type=jnp.float32) + bl_ref[...]
        o_ref[...] = out.astype(o_ref.dtype)
        # TODO(synk): Dropout(p=0.5) is identity in eval mode; training-mode dropout not implemented.
    return kernel


def _num_tensorcores():
    """Best-effort TensorCore count per chip (2 on megacore parts, else 1)."""
    try:
        if not pltpu.is_tpu_device():
            return 1
        info = pltpu.get_tpu_info()
        for name in ("num_cores", "core_count", "num_tensorcores",
                     "tensorcores_per_chip", "cores_per_chip"):
            n = getattr(info, name, None)
            if isinstance(n, int) and n >= 1:
                return n
    except Exception:
        pass
    return 1


def _choose_b_blk(B, T, n_cores, target_rows):
    """Sequences per grid block: large row tiles (~target_rows), 8-sublane aligned,
    >= n_cores grid steps only when there is enough work, minimal batch padding."""
    ceil_to = lambda v, m: -(-v // m) * m
    g = 8 // math.gcd(T, 8)                       # granularity so (b_blk * T) % 8 == 0
    b_hi = max(g, (target_rows // (T * g)) * g)   # ~target_rows rows per block
    b_hi = min(b_hi, ceil_to(B, g))               # never exceed the (padded) batch
    if n_cores > 1 and B * T >= n_cores * target_rows:
        b_hi = min(b_hi, ceil_to(-(-B // n_cores), g))   # keep >= n_cores parallel steps
    b_hi = max(b_hi, g)
    # among candidates in [b_hi/2, b_hi] (multiples of g), prefer the least batch padding
    best, best_pad = b_hi, (-B) % b_hi
    cand = b_hi - g
    while cand >= max(g, b_hi // 2) and best_pad > 0:
        pad = (-B) % cand
        if pad < best_pad:
            best, best_pad = cand, pad
        cand -= g
    return best


def phoneme_level_encoder(xs_nct, params, *, target_rows=2048):
    """xs_nct: (B, idim, T) float32, PyTorch Conv1d layout. Returns (B, T, out) float32."""
    B, idim, T = xs_nct.shape
    n_chans = params["w1"].shape[0]
    out_dim = params["wl"].shape[0]
    out_pad = ((out_dim + 127) // 128) * 128       # lane-dense output slab width

    n_cores = _num_tensorcores()
    b_blk = _choose_b_blk(B, T, n_cores, target_rows)
    B_pad = pl.cdiv(B, b_blk) * b_blk              # pad batch with dummy sequences
    rows_blk = b_blk * T
    grid = (B_pad // b_blk,)

    # channels-last f32, padded batch (dummy sequences are independent rows, sliced off below)
    x = jnp.transpose(xs_nct, (0, 2, 1)).astype(jnp.float32)          # (B, T, idim)
    if B_pad != B:
        x = jnp.concatenate([x, jnp.zeros((B_pad - B, T, idim), jnp.float32)], axis=0)

    # layer-1 tap stacking hoisted to XLA: columns [x[t-1] | x[t] | x[t+1]], zero "same" pad
    zrow = jnp.zeros((B_pad, 1, idim), jnp.float32)
    x_stk = jnp.concatenate(
        [jnp.concatenate([zrow, x[:, :-1, :]], axis=1),
         x,
         jnp.concatenate([x[:, 1:, :], zrow], axis=1)],
        axis=-1,
    ).reshape(B_pad * T, 3 * idim)

    # conv1 weights (Cout, Cin, 3) -> stacked taps (3*Cin, Cout), order [t-1; t; t+1]
    w1s = jnp.transpose(params["w1"], (2, 1, 0)).reshape(3 * idim, n_chans).astype(jnp.float32)
    # conv2 weights (Cout, Cin, 3) -> (3, Cin, Cout): one matrix per tap
    w2s = jnp.transpose(params["w2"], (2, 1, 0)).astype(jnp.float32)

    # packed per-channel vectors: conv1 bias, LN1 gamma/beta, conv2 bias
    vecs = jnp.stack([params["b1"], params["g1"], params["be1"], params["b2"]],
                     axis=0).astype(jnp.float32)

    # final linear with LN2 gamma/beta folded in (exact), zero-padded to 128 output lanes
    wl_fold = (params["wl"] * params["g2"][None, :]).T.astype(jnp.float32)    # (n_chans, out)
    bl_fold = (params["bl"] + params["wl"] @ params["be2"]).astype(jnp.float32)
    wl_p = jnp.zeros((n_chans, out_pad), jnp.float32).at[:, :out_dim].set(wl_fold)
    bl_p = jnp.zeros((1, out_pad), jnp.float32).at[:, :out_dim].set(bl_fold[None, :])

    full = lambda a: pl.BlockSpec(a.shape, lambda i, _nd=a.ndim: (0,) * _nd)  # VMEM-resident

    out_flat = pl.pallas_call(
        _make_kernel(rows_blk, T),
        out_shape=jax.ShapeDtypeStruct((B_pad * T, out_pad), jnp.bfloat16),
        grid=grid,
        in_specs=[
            pl.BlockSpec((rows_blk, 3 * idim), lambda i: (i, 0)),   # activation rows
            full(w1s), full(vecs), full(w2s), full(wl_p), full(bl_p),
        ],
        out_specs=pl.BlockSpec((rows_blk, out_pad), lambda i: (i, 0)),
        compiler_params=pltpu.CompilerParams(
            dimension_semantics=("parallel",),
            vmem_limit_bytes=32 * 1024 * 1024),
    )(x_stk, w1s, vecs, w2s, wl_p, bl_p)

    # The padded bf16 slab could be consumed directly downstream; slice/cast here to match
    # the module's (B, T, out) float32 interface.
    return out_flat[: B * T, :out_dim].astype(jnp.float32).reshape(B, T, out_dim)


def ref_forward(xs_nct, p):
    """Pure-JAX f32 reference matching the PyTorch module (eval mode)."""
    y = xs_nct.astype(jnp.float32)
    for i in (1, 2):
        y = lax.conv_general_dilated(y, p[f"w{i}"].astype(jnp.float32),
                                     window_strides=(1,), padding="SAME",
                                     dimension_numbers=("NCH", "OIH", "NCH"))
        y = y + p[f"b{i}"][None, :, None]
        y = jnp.maximum(y, 0.0)
        mean = jnp.mean(y, axis=1, keepdims=True)
        var = jnp.mean((y - mean) ** 2, axis=1, keepdims=True)
        y = (y - mean) * lax.rsqrt(var + EPS)
        y = y * p[f"g{i}"][None, :, None] + p[f"be{i}"][None, :, None]
    y = jnp.einsum("bct,oc->bto", y, p["wl"]) + p["bl"][None, None, :]
    return y


def make_params(key, idim, n_chans, out_dim, kernel_size=3):
    ks = jax.random.split(key, 8)
    scale = 0.1
    p = {
        # conv weights in PyTorch layout (Cout, Cin, K)
        "w1": scale * jax.random.normal(ks[0], (n_chans, idim, kernel_size), jnp.float32),
        "b1": scale * jax.random.normal(ks[1], (n_chans,), jnp.float32),
        "g1": 1.0 + scale * jax.random.normal(ks[2], (n_chans,), jnp.float32),
        "be1": scale * jax.random.normal(ks[3], (n_chans,), jnp.float32),
        "w2": scale * jax.random.normal(ks[4], (n_chans, n_chans, kernel_size), jnp.float32),
        "b2": scale * jax.random.normal(ks[5], (n_chans,), jnp.float32),
        "g2": 1.0 + scale * jax.random.normal(ks[6], (n_chans,), jnp.float32),
        "be2": scale * jax.random.normal(ks[7], (n_chans,), jnp.float32),
    }
    kl1, kl2 = jax.random.split(jax.random.fold_in(key, 99))
    p["wl"] = scale * jax.random.normal(kl1, (out_dim, n_chans), jnp.float32)  # (out, in)
    p["bl"] = scale * jax.random.normal(kl2, (out_dim,), jnp.float32)
    return p


if __name__ == "__main__":
    B, idim, T = 2, 8, 16          # xs: (B, idim, T) as the PyTorch module expects
    n_chans, out_dim = 128, 4      # lane-dense hidden width (module default is 256)

    key = jax.random.PRNGKey(0)
    kx, kp = jax.random.split(key)
    xs = jax.random.normal(kx, (B, idim, T), jnp.float32)
    params = make_params(kp, idim, n_chans, out_dim)

    out = jax.block_until_ready(phoneme_level_encoder(xs, params))
    ref = jax.block_until_ready(ref_forward(xs, params))

    assert out.shape == (B, T, out_dim), out.shape
    # Matmuls accumulate in f32; the only deliberate low-precision step is the bf16 output
    # slab (rel. error ~2^-8), so a 2e-2 tolerance holds with large margin.
    np.testing.assert_allclose(np.asarray(out), np.asarray(ref), rtol=2e-2, atol=2e-2)

    print("KERNEL_OK")
</pallas_src>

<mosaic_0001>
module attributes {stable_mosaic.version = 11 : i64} {
  func.func @kernel(%arg0: i32, %arg1: memref<32x24xf32, #tpu.memory_space<vmem>>, %arg2: memref<24x128xf32, #tpu.memory_space<vmem>>, %arg3: memref<4x128xf32, #tpu.memory_space<vmem>>, %arg4: memref<3x128x128xf32, #tpu.memory_space<vmem>>, %arg5: memref<128x128xf32, #tpu.memory_space<vmem>>, %arg6: memref<1x128xf32, #tpu.memory_space<vmem>>, %arg7: memref<32x128xbf16, #tpu.memory_space<vmem>>) attributes {dimension_semantics = [#tpu.dimension_semantics<parallel>], iteration_bounds = array<i64: 1>, scalar_prefetch = 0 : i64, scratch_operands = 0 : i64, tpu.core_type = #tpu.core_type<tc>, window_params = [{transform_indices = @transform_0, window_bounds = array<i64: 32, 24>}, {pipeline_mode = #tpu.pipeline_mode<synchronous>, transform_indices = @transform_1, window_bounds = array<i64: 24, 128>}, {pipeline_mode = #tpu.pipeline_mode<synchronous>, transform_indices = @transform_2, window_bounds = array<i64: 4, 128>}, {pipeline_mode = #tpu.pipeline_mode<synchronous>, transform_indices = @transform_3, window_bounds = array<i64: 3, 128, 128>}, {pipeline_mode = #tpu.pipeline_mode<synchronous>, transform_indices = @transform_4, window_bounds = array<i64: 128, 128>}, {pipeline_mode = #tpu.pipeline_mode<synchronous>, transform_indices = @transform_5, window_bounds = array<i64: 1, 128>}, {transform_indices = @transform_6, window_bounds = array<i64: 32, 128>}]} {
    %0 = tpu.iota {dimensions = array<i32: 0>} : vector<32x1xi32>
    %c16_i32 = arith.constant 16 : i32
    %c0_i32 = arith.constant 0 : i32
    %1 = arith.cmpi eq, %c16_i32, %c0_i32 : i32
    %c1_i32 = arith.constant 1 : i32
    %2 = arith.select %1, %c1_i32, %c16_i32 : i32
    %3 = vector.broadcast %2 : i32 to vector<32x1xi32>
    %4 = arith.remsi %0, %3 : vector<32x1xi32>
    %c0_i32_0 = arith.constant 0 : i32
    %5 = vector.broadcast %c0_i32_0 : i32 to vector<32x1xi32>
    %6 = arith.cmpi ne, %4, %5 : vector<32x1xi32>
    %c0_i32_1 = arith.constant 0 : i32
    %7 = vector.broadcast %c0_i32_1 : i32 to vector<32x1xi32>
    %8 = arith.cmpi slt, %4, %7 : vector<32x1xi32>
    %c0_i32_2 = arith.constant 0 : i32
    %9 = arith.cmpi slt, %2, %c0_i32_2 : i32
    %10 = vector.broadcast %9 : i1 to vector<32x1xi1>
    %11 = vector.broadcast %10 : vector<32x1xi1> to vector<32x1xi1>
    %12 = arith.xori %8, %11 : vector<32x1xi1>
    %13 = arith.andi %12, %6 : vector<32x1xi1>
    %14 = vector.broadcast %2 : i32 to vector<32x1xi32>
    %15 = arith.addi %4, %14 : vector<32x1xi32>
    %16 = arith.select %13, %15, %4 : vector<32x1xi1>, vector<32x1xi32>
    %c0_i32_3 = arith.constant 0 : i32
    %17 = vector.broadcast %c0_i32_3 : i32 to vector<32x1xi32>
    %18 = arith.cmpi eq, %16, %17 : vector<32x1xi32>
    %c15_i32 = arith.constant 15 : i32
    %19 = vector.broadcast %c15_i32 : i32 to vector<32x1xi32>
    %20 = arith.cmpi eq, %16, %19 : vector<32x1xi32>
    %c0 = arith.constant 0 : index
    %c0_4 = arith.constant 0 : index
    %21 = vector.load %arg3[%c0, %c0_4] : memref<4x128xf32, #tpu.memory_space<vmem>>, vector<1x128xf32>
    %c1 = arith.constant 1 : index
    %c0_5 = arith.constant 0 : index
    %22 = vector.load %arg3[%c1, %c0_5] : memref<4x128xf32, #tpu.memory_space<vmem>>, vector<1x128xf32>
    %c2 = arith.constant 2 : index
    %c0_6 = arith.constant 0 : index
    %23 = vector.load %arg3[%c2, %c0_6] : memref<4x128xf32, #tpu.memory_space<vmem>>, vector<1x128xf32>
    %c3 = arith.constant 3 : index
    %c0_7 = arith.constant 0 : index
    %24 = vector.load %arg3[%c3, %c0_7] : memref<4x128xf32, #tpu.memory_space<vmem>>, vector<1x128xf32>
    %c0_8 = arith.constant 0 : index
    %c0_9 = arith.constant 0 : index
    %25 = vector.load %arg1[%c0_8, %c0_9] : memref<32x24xf32, #tpu.memory_space<vmem>>, vector<32x24xf32>
    %c0_10 = arith.constant 0 : index
    %c0_11 = arith.constant 0 : index
    %26 = vector.load %arg2[%c0_10, %c0_11] : memref<24x128xf32, #tpu.memory_space<vmem>>, vector<24x128xf32>
    %cst = arith.constant dense<0.000000e+00> : vector<32x128xf32>
    %27 = tpu.matmul %25, %26, %cst {dimension_numbers = #tpu.dot_dimension_numbers<[1], [0], [0], [1], [0, 0, 1, 1], [], []>} : vector<32x24xf32>, vector<24x128xf32>, vector<32x128xf32> -> vector<32x128xf32>
    %28 = vector.broadcast %21 : vector<1x128xf32> to vector<32x128xf32>
    %29 = arith.addf %27, %28 : vector<32x128xf32>
    %cst_12 = arith.constant 0.000000e+00 : f32
    %30 = vector.broadcast %cst_12 : f32 to vector<32x128xf32>
    %31 = arith.maximumf %29, %30 : vector<32x128xf32>
    %cst_13 = arith.constant dense<0.000000e+00> : vector<32xf32>
    %32 = vector.multi_reduction <add>, %31, %cst_13 [1] : vector<32x128xf32> to vector<32xf32>
    %33 = vector.shape_cast %32 : vector<32xf32> to vector<32x1xf32>
    %cst_14 = arith.constant 1.280000e+02 : f32
    %34 = vector.broadcast %cst_14 : f32 to vector<32x1xf32>
    %35 = arith.divf %33, %34 : vector<32x1xf32>
    %36 = vector.broadcast %35 : vector<32x1xf32> to vector<32x128xf32>
    %37 = arith.subf %31, %36 : vector<32x128xf32>
    %38 = arith.mulf %37, %37 : vector<32x128xf32>
    %cst_15 = arith.constant dense<0.000000e+00> : vector<32xf32>
    %39 = vector.multi_reduction <add>, %38, %cst_15 [1] : vector<32x128xf32> to vector<32xf32>
    %40 = vector.shape_cast %39 : vector<32xf32> to vector<32x1xf32>
    %cst_16 = arith.constant 1.280000e+02 : f32
    %41 = vector.broadcast %cst_16 : f32 to vector<32x1xf32>
    %42 = arith.divf %40, %41 : vector<32x1xf32>
    %cst_17 = arith.constant 9.99999974E-6 : f32
    %43 = vector.broadcast %cst_17 : f32 to vector<32x1xf32>
    %44 = arith.addf %42, %43 : vector<32x1xf32>
    %45 = math.rsqrt %44 : vector<32x1xf32>
    %46 = vector.broadcast %45 : vector<32x1xf32> to vector<32x128xf32>
    %47 = arith.mulf %37, %46 : vector<32x128xf32>
    %48 = vector.broadcast %22 : vector<1x128xf32> to vector<32x128xf32>
    %49 = arith.mulf %47, %48 : vector<32x128xf32>
    %50 = vector.broadcast %23 : vector<1x128xf32> to vector<32x128xf32>
    %51 = arith.addf %49, %50 : vector<32x128xf32>
    %cst_18 = arith.constant 0.000000e+00 : f32
    %52 = vector.broadcast %cst_18 : f32 to vector<32x128xf32>
    %53 = vector.extract_strided_slice %51 {offsets = [31, 0], sizes = [1, 128], strides = [1, 1]} : vector<32x128xf32> to vector<1x128xf32>
    %54 = vector.extract_strided_slice %51 {offsets = [0, 0], sizes = [31, 128], strides = [1, 1]} : vector<32x128xf32> to vector<31x128xf32>
    %55 = tpu.concatenate %53, %54 in 0 : vector<1x128xf32>, vector<31x128xf32> -> vector<32x128xf32>
    %56 = vector.shape_cast %18 : vector<32x1xi1> to vector<32x1xi1>
    %57 = vector.broadcast %56 : vector<32x1xi1> to vector<32x128xi1>
    %58 = arith.select %57, %52, %55 : vector<32x128xi1>, vector<32x128xf32>
    %59 = vector.extract_strided_slice %51 {offsets = [1, 0], sizes = [31, 128], strides = [1, 1]} : vector<32x128xf32> to vector<31x128xf32>
    %60 = vector.extract_strided_slice %51 {offsets = [0, 0], sizes = [1, 128], strides = [1, 1]} : vector<32x128xf32> to vector<1x128xf32>
    %61 = tpu.concatenate %59, %60 in 0 : vector<31x128xf32>, vector<1x128xf32> -> vector<32x128xf32>
    %62 = vector.shape_cast %20 : vector<32x1xi1> to vector<32x1xi1>
    %63 = vector.broadcast %62 : vector<32x1xi1> to vector<32x128xi1>
    %64 = arith.select %63, %52, %61 : vector<32x128xi1>, vector<32x128xf32>
    %c0_19 = arith.constant 0 : index
    %c0_20 = arith.constant 0 : index
    %c0_21 = arith.constant 0 : index
    %65 = vector.load %arg4[%c0_19, %c0_20, %c0_21] : memref<3x128x128xf32, #tpu.memory_space<vmem>>, vector<1x128x128xf32>
    %66 = vector.shape_cast %65 : vector<1x128x128xf32> to vector<128x128xf32>
    %cst_22 = arith.constant dense<0.000000e+00> : vector<32x128xf32>
    %67 = tpu.matmul %58, %66, %cst_22 {dimension_numbers = #tpu.dot_dimension_numbers<[1], [0], [0], [1], [0, 0, 1, 1], [], []>} : vector<32x128xf32>, vector<128x128xf32>, vector<32x128xf32> -> vector<32x128xf32>
    %c1_23 = arith.constant 1 : index
    %c0_24 = arith.constant 0 : index
    %c0_25 = arith.constant 0 : index
    %68 = vector.load %arg4[%c1_23, %c0_24, %c0_25] : memref<3x128x128xf32, #tpu.memory_space<vmem>>, vector<1x128x128xf32>
    %69 = vector.shape_cast %68 : vector<1x128x128xf32> to vector<128x128xf32>
    %cst_26 = arith.constant dense<0.000000e+00> : vector<32x128xf32>
    %70 = tpu.matmul %51, %69, %cst_26 {dimension_numbers = #tpu.dot_dimension_numbers<[1], [0], [0], [1], [0, 0, 1, 1], [], []>} : vector<32x128xf32>, vector<128x128xf32>, vector<32x128xf32> -> vector<32x128xf32>
    %71 = arith.addf %67, %70 : vector<32x128xf32>
    %c2_27 = arith.constant 2 : index
    %c0_28 = arith.constant 0 : index
    %c0_29 = arith.constant 0 : index
    %72 = vector.load %arg4[%c2_27, %c0_28, %c0_29] : memref<3x128x128xf32, #tpu.memory_space<vmem>>, vector<1x128x128xf32>
    %73 = vector.shape_cast %72 : vector<1x128x128xf32> to vector<128x128xf32>
    %cst_30 = arith.constant dense<0.000000e+00> : vector<32x128xf32>
    %74 = tpu.matmul %64, %73, %cst_30 {dimension_numbers = #tpu.dot_dimension_numbers<[1], [0], [0], [1], [0, 0, 1, 1], [], []>} : vector<32x128xf32>, vector<128x128xf32>, vector<32x128xf32> -> vector<32x128xf32>
    %75 = arith.addf %71, %74 : vector<32x128xf32>
    %76 = vector.broadcast %24 : vector<1x128xf32> to vector<32x128xf32>
    %77 = arith.addf %75, %76 : vector<32x128xf32>
    %cst_31 = arith.constant 0.000000e+00 : f32
    %78 = vector.broadcast %cst_31 : f32 to vector<32x128xf32>
    %79 = arith.maximumf %77, %78 : vector<32x128xf32>
    %cst_32 = arith.constant dense<0.000000e+00> : vector<32xf32>
    %80 = vector.multi_reduction <add>, %79, %cst_32 [1] : vector<32x128xf32> to vector<32xf32>
    %81 = vector.shape_cast %80 : vector<32xf32> to vector<32x1xf32>
    %cst_33 = arith.constant 1.280000e+02 : f32
    %82 = vector.broadcast %cst_33 : f32 to vector<32x1xf32>
    %83 = arith.divf %81, %82 : vector<32x1xf32>
    %84 = vector.broadcast %83 : vector<32x1xf32> to vector<32x128xf32>
    %85 = arith.subf %79, %84 : vector<32x128xf32>
    %86 = arith.mulf %85, %85 : vector<32x128xf32>
    %cst_34 = arith.constant dense<0.000000e+00> : vector<32xf32>
    %87 = vector.multi_reduction <add>, %86, %cst_34 [1] : vector<32x128xf32> to vector<32xf32>
    %88 = vector.shape_cast %87 : vector<32xf32> to vector<32x1xf32>
    %cst_35 = arith.constant 1.280000e+02 : f32
    %89 = vector.broadcast %cst_35 : f32 to vector<32x1xf32>
    %90 = arith.divf %88, %89 : vector<32x1xf32>
    %cst_36 = arith.constant 9.99999974E-6 : f32
    %91 = vector.broadcast %cst_36 : f32 to vector<32x1xf32>
    %92 = arith.addf %90, %91 : vector<32x1xf32>
    %93 = math.rsqrt %92 : vector<32x1xf32>
    %94 = vector.broadcast %93 : vector<32x1xf32> to vector<32x128xf32>
    %95 = arith.mulf %85, %94 : vector<32x128xf32>
    %c0_37 = arith.constant 0 : index
    %c0_38 = arith.constant 0 : index
    %96 = vector.load %arg5[%c0_37, %c0_38] : memref<128x128xf32, #tpu.memory_space<vmem>>, vector<128x128xf32>
    %cst_39 = arith.constant dense<0.000000e+00> : vector<32x128xf32>
    %97 = tpu.matmul %95, %96, %cst_39 {dimension_numbers = #tpu.dot_dimension_numbers<[1], [0], [0], [1], [0, 0, 1, 1], [], []>} : vector<32x128xf32>, vector<128x128xf32>, vector<32x128xf32> -> vector<32x128xf32>
    %c0_40 = arith.constant 0 : index
    %c0_41 = arith.constant 0 : index
    %98 = vector.load %arg6[%c0_40, %c0_41] : memref<1x128xf32, #tpu.memory_space<vmem>>, vector<1x128xf32>
    %99 = vector.broadcast %98 : vector<1x128xf32> to vector<32x128xf32>
    %100 = arith.addf %97, %99 : vector<32x128xf32>
    %101 = arith.truncf %100 : vector<32x128xf32> to vector<32x128xbf16>
    %c0_42 = arith.constant 0 : index
    %c0_43 = arith.constant 0 : index
    %102 = vector.load %arg7[%c0_42, %c0_43] : memref<32x128xbf16, #tpu.memory_space<vmem>>, vector<32x128xbf16>
    tpu.vector_store %arg7[%c0_42, %c0_43], %101 {strides = array<i32>} : memref<32x128xbf16, #tpu.memory_space<vmem>>, vector<32x128xbf16>,
    return
  }
  func.func @transform_0(%arg0: i32) -> (i32, i32) {
    %c0_i32 = arith.constant 0 : i32
    %c0_i32_0 = arith.constant 0 : i32
    return %arg0, %c0_i32 : i32, i32
  }
  func.func @transform_1(%arg0: i32) -> (i32, i32) {
    %c0_i32 = arith.constant 0 : i32
    %c0_i32_0 = arith.constant 0 : i32
    %c0_i32_1 = arith.constant 0 : i32
    return %c0_i32, %c0_i32_0 : i32, i32
  }
  func.func @transform_2(%arg0: i32) -> (i32, i32) {
    %c0_i32 = arith.constant 0 : i32
    %c0_i32_0 = arith.constant 0 : i32
    %c0_i32_1 = arith.constant 0 : i32
    return %c0_i32, %c0_i32_0 : i32, i32
  }
  func.func @transform_3(%arg0: i32) -> (i32, i32, i32) {
    %c0_i32 = arith.constant 0 : i32
    %c0_i32_0 = arith.constant 0 : i32
    %c0_i32_1 = arith.constant 0 : i32
    %c0_i32_2 = arith.constant 0 : i32
    return %c0_i32, %c0_i32_0, %c0_i32_1 : i32, i32, i32
  }
  func.func @transform_4(%arg0: i32) -> (i32, i32) {
    %c0_i32 = arith.constant 0 : i32
    %c0_i32_0 = arith.constant 0 : i32
    %c0_i32_1 = arith.constant 0 : i32
    return %c0_i32, %c0_i32_0 : i32, i32
  }
  func.func @transform_5(%arg0: i32) -> (i32, i32) {
    %c0_i32 = arith.constant 0 : i32
    %c0_i32_0 = arith.constant 0 : i32
    %c0_i32_1 = arith.constant 0 : i32
    return %c0_i32, %c0_i32_0 : i32, i32
  }
  func.func @transform_6(%arg0: i32) -> (i32, i32) {
    %c0_i32 = arith.constant 0 : i32
    %c0_i32_0 = arith.constant 0 : i32
    return %arg0, %c0_i32 : i32, i32
  }
}

</mosaic_0001>

<llo_original>
// kernel: tpu_custom_call.1
$region0: #{tpu_custom_call.1}
  #allocation0 [shape = 'u32[]', space=smem, size = 0x4, offset = 0x4, fixed_abs, tag = 'smem constant byte address 0x4 - core index']
  #allocation1 [shape = 'u32[144,128]{1,0:T(1,128)}', space=vmem, size = 0x12000, scoped, tag = 'internal scratch']
  %s0 = inlined_call_operand.vmem [shape: f32[32,24], index: 0, kind: input, shape index: {}]
  %s1 = inlined_call_operand.vmem [shape: f32[24,128], index: 1, kind: input, shape index: {}]
  %s2 = inlined_call_operand.vmem [shape: f32[4,128], index: 2, kind: input, shape index: {}]
  %s3 = inlined_call_operand.hbm [shape: f32[3,128,128], index: 3, kind: input, shape index: {}]
  %s4 = inlined_call_operand.hbm [shape: f32[128,128], index: 4, kind: input, shape index: {}]
  %s5 = inlined_call_operand.vmem [shape: f32[1,128], index: 5, kind: input, shape index: {}]
  %s6 = inlined_call_operand.hbm [shape: bf16[32,128], index: 6, kind: output, shape index: {}]
  %s7 = sld [smem:[#allocation0]]
  $region42: #{tpu_custom_call.1} parent=0
    _
  %s9 = ssub.s32 1, %s7
  %s10 = scalar_select 0, %s9, %s7
  $region1: #{tpu_custom_call.1} parent=0
    #allocation2 [shape = 'u8[196608]{0}', space=vmem, size = 0x30000, scoped, tag = 'input window, operand 3, single buffered']
    #allocation3 [shape = 's32[1]{0}', space=sflag, size = 0x4, scoped, tag = 'scoped memory for tpu_custom_call.1']
    #allocation4 [shape = 's32[1]{0}', space=sflag, size = 0x4, scoped, tag = 'scoped memory for tpu_custom_call.1']
    #allocation5 [shape = 'u8[65536]{0}', space=vmem, size = 0x10000, scoped, tag = 'input window, operand 4, single buffered']
    #allocation6 [shape = 's32[1]{0}', space=sflag, size = 0x4, scoped, tag = 'scoped memory for tpu_custom_call.1']
    #allocation7 [shape = 'u8[8192]{0}', space=vmem, size = 0x2000, scoped, tag = 'output window, operand 0, single buffered']
    %11 = vsyncpa [#allocation3], 0
    %12 = vsyncpa [#allocation6], 0
    %13 = vsyncpa [#allocation4], 0
    // Predicated region
    $region2: #{tpu_custom_call.1} parent=1 // pred_check
      _
    $region3: #{tpu_custom_call.1} parent=1 // pred_check_branch
      %15 = sbr.rel (0) target = $region5
    $region4: #{tpu_custom_call.1} parent=1 // pred_region
      _
    $region5: #{tpu_custom_call.1} parent=1 // pred_fallthru
      _
    // Predicated region
    $region6: #{tpu_custom_call.1} parent=1 // pred_check
      _
    $region7: #{tpu_custom_call.1} parent=1 // pred_check_branch
      %17 = sbr.rel (0) target = $region9
    $region8: #{tpu_custom_call.1} parent=1 // pred_region
      _
    $region9: #{tpu_custom_call.1} parent=1 // pred_fallthru
      _
    // Predicated region
    $region10: #{tpu_custom_call.1} parent=1 // pred_check
      _
    $region11: #{tpu_custom_call.1} parent=1 // pred_check_branch
      %19 = sbr.rel (0) target = $region13
    $region12: #{tpu_custom_call.1} parent=1 // pred_region
      _
    $region13: #{tpu_custom_call.1} parent=1 // pred_fallthru
      _
    // Predicated region
    $region14: #{tpu_custom_call.1} parent=1 // pred_check
      _
    $region15: #{tpu_custom_call.1} parent=1 // pred_check_branch
      %21 = sbr.rel (0) target = $region17
    $region16: #{tpu_custom_call.1} parent=1 // pred_region
      %s23 = ssub.s32 6144, 6144
      %24 = vsyncadd [#allocation3], %s23
      %s25 = sshll.u32 [#allocation2], 4
      %s26 = int_to_ptr.vmem [resolvable:$true] %s25
      %31 = dma.hbm_to_vmem [thread:$0]  %s3, 6144, %s26, [#allocation3], 128, 128, 8
    $region17: #{tpu_custom_call.1} parent=1 // pred_fallthru
      _
    // Predicated region
    $region18: #{tpu_custom_call.1} parent=1 // pred_check
      _
    $region19: #{tpu_custom_call.1} parent=1 // pred_check_branch
      %33 = sbr.rel (0) target = $region21
    $region20: #{tpu_custom_call.1} parent=1 // pred_region
      %s35 = ssub.s32 2048, 2048
      %36 = vsyncadd [#allocation6], %s35
      %s37 = sshll.u32 [#allocation5], 4
      %s38 = int_to_ptr.vmem [resolvable:$true] %s37
      %43 = dma.hbm_to_vmem [thread:$0]  %s4, 2048, %s38, [#allocation6], 128, 128, 8
    $region21: #{tpu_custom_call.1} parent=1 // pred_fallthru
      _
    // Predicated region
    $region22: #{tpu_custom_call.1} parent=1 // pred_check
      _
    $region23: #{tpu_custom_call.1} parent=1 // pred_check_branch
      %45 = sbr.rel (0) target = $region25
    $region24: #{tpu_custom_call.1} parent=1 // pred_region
      _
    $region25: #{tpu_custom_call.1} parent=1 // pred_fallthru
      _
    // Predicated region
    $region26: #{tpu_custom_call.1} parent=1 // pred_check
      _
    $region27: #{tpu_custom_call.1} parent=1 // pred_check_branch
      %47 = sbr.rel (0) target = $region29
    $region28: #{tpu_custom_call.1} parent=1 // pred_region
      %48 = dma.done [#allocation3], 6144
    $region29: #{tpu_custom_call.1} parent=1 // pred_fallthru
      _
    // Predicated region
    $region30: #{tpu_custom_call.1} parent=1 // pred_check
      _
    $region31: #{tpu_custom_call.1} parent=1 // pred_check_branch
      %50 = sbr.rel (0) target = $region33
    $region32: #{tpu_custom_call.1} parent=1 // pred_region
      %51 = dma.done [#allocation6], 2048
    $region33: #{tpu_custom_call.1} parent=1 // pred_fallthru
      _
    %v52 = vlaneseq
    %v53 = vshrl.u32 %v52, 7
    %v54 = vadd.s32 %v53, 8
    %v55 = vadd.s32 %v53, 16
    %v56 = vadd.s32 %v53, 24
    %vm57 = vcmp.lt.s32.totalorder %v53, 0
    %v58 = vsub.s32 0, %v53
    %v59 = vsel %vm57, %v58, %v53
    %v60 = vshrl.u32 %v59, 4
    %v61 = vand.u32 %v59, 15
    %v62 = vsub.s32 0, %v61
    %v63 = vsel %vm57, %v62, %v61
    %vm64 = vcmp.lt.s32.totalorder %v54, 0
    %v65 = vsub.s32 0, %v54
    %v66 = vsel %vm64, %v65, %v54
    %v67 = vshrl.u32 %v66, 4
    %v68 = vand.u32 %v66, 15
    %v69 = vsub.s32 0, %v68
    %v70 = vsel %vm64, %v69, %v68
    %vm71 = vcmp.lt.s32.totalorder %v55, 0
    %v72 = vsub.s32 0, %v55
    %v73 = vsel %vm71, %v72, %v55
    %v74 = vshrl.u32 %v73, 4
    %v75 = vand.u32 %v73, 15
    %v76 = vsub.s32 0, %v75
    %v77 = vsel %vm71, %v76, %v75
    %vm78 = vcmp.lt.s32.totalorder %v56, 0
    %v79 = vsub.s32 0, %v56
    %v80 = vsel %vm78, %v79, %v56
    %v81 = vshrl.u32 %v80, 4
    %v82 = vand.u32 %v80, 15
    %v83 = vsub.s32 0, %v82
    %v84 = vsel %vm78, %v83, %v82
    %vm85 = vcmp.ne.s32.totalorder %v63, 0
    %vm86 = vcmp.ne.s32.totalorder %v70, 0
    %vm87 = vcmp.ne.s32.totalorder %v77, 0
    %vm88 = vcmp.ne.s32.totalorder %v84, 0
    %vm89 = vcmp.lt.s32.totalorder %v63, 0
    %vm90 = vcmp.lt.s32.totalorder %v70, 0
    %vm91 = vcmp.lt.s32.totalorder %v77, 0
    %vm92 = vcmp.lt.s32.totalorder %v84, 0
    %vm93 = vmand %vm89, %vm85
    %vm94 = vmand %vm90, %vm86
    %vm95 = vmand %vm91, %vm87
    %vm96 = vmand %vm92, %vm88
    %v97 = vadd.s32 %v63, 16
    %v98 = vadd.s32 %v70, 16
    %v99 = vadd.s32 %v77, 16
    %v100 = vadd.s32 %v84, 16
    %v101 = vsel %vm93, %v97, %v63
    %v102 = vsel %vm94, %v98, %v70
    %v103 = vsel %vm95, %v99, %v77
    %v104 = vsel %vm96, %v100, %v84
    %vm105 = vcmp.eq.s32.totalorder %v101, 0
    %vm106 = vcmp.eq.s32.totalorder %v102, 0
    %vm107 = vcmp.eq.s32.totalorder %v103, 0
    %vm108 = vcmp.eq.s32.totalorder %v104, 0
    %vm109 = vcmp.eq.s32.totalorder %v101, 15
    %vm110 = vcmp.eq.s32.totalorder %v102, 15
    %vm111 = vcmp.eq.s32.totalorder %v103, 15
    %vm112 = vcmp.eq.s32.totalorder %v104, 15
    %v113 = vld [vmem:[%s2] sm:$0x1]
    %v114 = vld [vmem:[%s2 + $0x1] sm:$0x1]
    %v115 = vld [vmem:[%s2 + $0x2] sm:$0x1]
    %v116 = vld [vmem:[%s2 + $0x3] sm:$0x1]
    %v117 = vld [vmem:[%s0] sm:$0xff]
    %v118 = vld [vmem:[%s0 + $0x8] sm:$0xff]
    %v119 = vld [vmem:[%s0 + $0x10] sm:$0xff]
    %v120 = vld [vmem:[%s0 + $0x18] sm:$0xff]
    %v121 = vld [vmem:[%s1] sm:$0xff]
    %v122 = vld [vmem:[%s1 + $0x8] sm:$0xff]
    %v123 = vld [vmem:[%s1 + $0x10] sm:$0xff]
    %v124 = vlaneseq
    %v125 = vshrl.u32 %v124, 7
    %v126 = vsub.s32 0, %v125
    %v127 = vrot.slane %v113, %v126
    %vm128 = vcmask 195584
    %v130 = vsel %vm128, %v117, 0
    %v133 = vsel %vm128, %v118, 0
    %v136 = vsel %vm128, %v119, 0
    %v139 = vsel %vm128, %v120, 0
    %141 = vmatprep.subr.mxu0 0.0
    %142 = vmatpush1.msra.mxu0 %v121
    %143 = vmatprep.subr.mxu0 0.0
    %144 = vmatpush1.msra.mxu0 %v122
    %145 = vmatprep.subr.mxu0 0.0
    %146 = vmatpush1.msra.mxu0 %v123
    %147 = vmatprep.subr.mxu0 0.0
    %148 = vmatpush1.msra.mxu0 0.0
    %149 = vmatprep.subr.mxu0 0.0
    %150 = vmatpush1.msra.mxu0 0.0
    %151 = vmatprep.subr.mxu0 0.0
    %152 = vmatpush1.msra.mxu0 0.0
    %153 = vmatprep.subr.mxu0 0.0
    %154 = vmatpush1.msra.mxu0 0.0
    %155 = vmatprep.subr.mxu0 0.0
    %156 = vmatpush1.msra.mxu0 0.0
    %157 = vmatprep.subr.mxu0 0.0
    %158 = vmatpush1.msra.mxu0 0.0
    %159 = vmatprep.subr.mxu0 0.0
    %160 = vmatpush1.msra.mxu0 0.0
    %161 = vmatprep.subr.mxu0 0.0
    %162 = vmatpush1.msra.mxu0 0.0
    %163 = vmatprep.subr.mxu0 0.0
    %164 = vmatpush1.msra.mxu0 0.0
    %165 = vmatprep.subr.mxu0 0.0
    %166 = vmatpush1.msra.mxu0 0.0
    %167 = vmatprep.subr.mxu0 0.0
    %168 = vmatpush1.msra.mxu0 0.0
    %169 = vmatprep.subr.mxu0 0.0
    %170 = vmatpush1.msra.mxu0 0.0
    %171 = vmatprep.subr.mxu0 0.0
    %172 = vmatpush1.msra.mxu0 0.0
    %173 = vmatprep.subr.mxu0 0.0
    %174 = vmatpush1.msra.mxu0 0.0
    %175 = vmatprep.subr.mxu0 0.0
    %176 = vmatpush1.msra.mxu0 0.0
    %177 = vmatprep.subr.mxu0 0.0
    %178 = vmatpush1.msra.mxu0 0.0
    %179 = vmatprep.subr.mxu0 0.0
    %180 = vmatpush1.msra.mxu0 0.0
    %181 = vmatprep.subr.mxu0 0.0
    %182 = vmatpush1.msra.mxu0 0.0
    %183 = vmatprep.subr.mxu0 0.0
    %184 = vmatpush1.msra.mxu0 0.0
    %185 = vmatprep.subr.mxu0 0.0
    %186 = vmatpush1.msra.mxu0 0.0
    %187 = vmatprep.subr.mxu0 0.0
    %188 = vmatpush1.msra.mxu0 0.0
    %189 = vmatprep.subr.mxu0 0.0
    %190 = vmatpush1.msra.mxu0 0.0
    %191 = vmatprep.subr.mxu0 0.0
    %192 = vmatpush1.msra.mxu0 0.0
    %193 = vmatprep.subr.mxu0 0.0
    %194 = vmatpush1.msra.mxu0 0.0
    %195 = vmatprep.subr.mxu0 0.0
    %196 = vmatpush1.msra.mxu0 0.0
    %197 = vmatprep.subr.mxu0 0.0
    %198 = vmatpush1.msra.mxu0 0.0
    %199 = vmatprep.subr.mxu0 0.0
    %200 = vmatpush1.msra.mxu0 0.0
    %201 = vmatprep.subr.mxu0 0.0
    %202 = vmatpush1.msra.mxu0 0.0
    %203 = vmatprep.subr.mxu0 0.0
    %204 = vmatpush1.msra.mxu0 0.0
    %205 = vmatprep.mubr.f32.mxu0 0.0
    %206 = vmatmul.mubr.f32.gmra.mrb[0].mxu0 %v130
    %v207 = vpop.f32.mrb[0].mxu0
    %v208 = vadd.f32 %v127, %v207
    %v209 = vpop.f32.mrb[0].mxu0
    %210 = vmatprep.mubr.f32.mxu0 0.0
    %211 = vmatmul.mubr.f32.gmra.mrb[0].mxu0 %v133
    %v212 = vpop.f32.mrb[0].mxu0
    %v213 = vadd.f32 %v127, %v212
    %v214 = vpop.f32.mrb[0].mxu0
    %215 = vmatprep.mubr.f32.mxu0 0.0
    %216 = vmatmul.mubr.f32.gmra.mrb[0].mxu0 %v136
    %v217 = vpop.f32.mrb[0].mxu0
    %v218 = vadd.f32 %v127, %v217
    %v219 = vpop.f32.mrb[0].mxu0
    %220 = vmatprep.mubr.f32.mxu0 0.0
    %221 = vmatmul.mubr.f32.gmra.mrb[0].mxu0 %v139
    %v222 = vpop.f32.mrb[0].mxu0
    %v223 = vadd.f32 %v127, %v222
    %v224 = vpop.f32.mrb[0].mxu0
    %225 = vdwg.mxu0
    %v226 = vmax.f32 %v208, 0.0
    %v227 = vmax.f32 %v213, 0.0
    %v228 = vmax.f32 %v218, 0.0
    %v229 = vmax.f32 %v223, 0.0
    %230 = vadd.xlane.f32.xlu0 %v226
    %v231 = vpop.xlane.xlu0 %230
    %232 = vadd.xlane.f32.xlu0 %v227
    %v233 = vpop.xlane.xlu0 %232
    %234 = vadd.xlane.f32.xlu0 %v228
    %v235 = vpop.xlane.xlu0 %234
    %236 = vadd.xlane.f32.xlu0 %v229
    %v237 = vpop.xlane.xlu0 %236
    %v238 = vrcp.pop 128.0
    %v239 = vmul.f32 %v231, %v238
    %v240 = vmul.f32 %v233, %v238
    %v241 = vmul.f32 %v235, %v238
    %v242 = vmul.f32 %v237, %v238
    %v243 = vsub.f32 %v226, %v239
    %v244 = vsub.f32 %v227, %v240
    %v245 = vsub.f32 %v228, %v241
    %v246 = vsub.f32 %v229, %v242
    %v247 = vmul.f32 %v243, %v243
    %v248 = vmul.f32 %v244, %v244
    %v249 = vmul.f32 %v245, %v245
    %v250 = vmul.f32 %v246, %v246
    %251 = vadd.xlane.f32.xlu0 %v247
    %v252 = vpop.xlane.xlu0 %251
    %253 = vadd.xlane.f32.xlu0 %v248
    %v254 = vpop.xlane.xlu0 %253
    %255 = vadd.xlane.f32.xlu0 %v249
    %v256 = vpop.xlane.xlu0 %255
    %257 = vadd.xlane.f32.xlu0 %v250
    %v258 = vpop.xlane.xlu0 %257
    %v259 = vmul.f32 %v252, %v238
    %v260 = vmul.f32 %v254, %v238
    %v261 = vmul.f32 %v256, %v238
    %v262 = vmul.f32 %v258, %v238
    %v263 = vadd.f32 %v259, 1e-05
    %v264 = vadd.f32 %v260, 1e-05
    %v265 = vadd.f32 %v261, 1e-05
    %v266 = vadd.f32 %v262, 1e-05
    %v267 = vrsqrt.pop %v263
    %v268 = vrsqrt.pop %v264
    %v269 = vrsqrt.pop %v265
    %v270 = vrsqrt.pop %v266
    %v271 = vmul.f32 %v243, %v267
    %v272 = vmul.f32 %v244, %v268
    %v273 = vmul.f32 %v245, %v269
    %v274 = vmul.f32 %v246, %v270
    %v275 = vlaneseq
    %v276 = vshrl.u32 %v275, 7
    %v277 = vsub.s32 0, %v276
    %v278 = vrot.slane %v114, %v277
    %v279 = vmul.f32 %v271, %v278
    %v280 = vmul.f32 %v272, %v278
    %v281 = vmul.f32 %v273, %v278
    %v282 = vmul.f32 %v274, %v278
    %v283 = vlaneseq
    %v284 = vshrl.u32 %v283, 7
    %v285 = vsub.s32 0, %v284
    %v286 = vrot.slane %v115, %v285
    %v287 = vadd.f32 %v279, %v286
    %v288 = vadd.f32 %v280, %v286
    %v289 = vadd.f32 %v281, %v286
    %v290 = vadd.f32 %v282, %v286
    %v292 = vrot.slane %v290, 7
    %vm297 = vcmask 1040384
    %v298 = vrot.slane %v287, 7
    %v299 = vrot.slane %v288, 7
    %v300 = vsel %vm297, %v298, %v299
    %v301 = vrot.slane %v289, 7
    %v302 = vsel %vm297, %v299, %v301
    %v303 = vsel %vm297, %v301, %v292
    %v308 = vsel %vm297, %v292, %v298
    %v309 = vsel %vm105, 1, 0
    %v310 = vsel %vm106, 1, 0
    %v311 = vsel %vm107, 1, 0
    %v312 = vsel %vm108, 1, 0
    %vm313 = vcmp.eq.s32.totalorder %v309, 1
    %vm314 = vcmp.eq.s32.totalorder %v310, 1
    %vm315 = vcmp.eq.s32.totalorder %v311, 1
    %vm316 = vcmp.eq.s32.totalorder %v312, 1
    %v317 = vsel %vm313, 0.0, %v308
    %v318 = vsel %vm314, 0.0, %v300
    %v319 = vsel %vm315, 0.0, %v302
    %v320 = vsel %vm316, 0.0, %v303
    %vm321 = vcmask 1046528
    %v322 = vrot.slane %v287, 1
    %v323 = vrot.slane %v288, 1
    %v324 = vsel %vm321, %v322, %v323
    %v325 = vrot.slane %v289, 1
    %v326 = vsel %vm321, %v323, %v325
    %v327 = vrot.slane %v290, 1
    %v328 = vsel %vm321, %v325, %v327
    %v334 = vsel %vm321, %v327, %v322
    %v335 = vsel %vm109, 1, 0
    %v336 = vsel %vm110, 1, 0
    %v337 = vsel %vm111, 1, 0
    %v338 = vsel %vm112, 1, 0
    %vm339 = vcmp.eq.s32.totalorder %v335, 1
    %vm340 = vcmp.eq.s32.totalorder %v336, 1
    %vm341 = vcmp.eq.s32.totalorder %v337, 1
    %vm342 = vcmp.eq.s32.totalorder %v338, 1
    %v343 = vsel %vm339, 0.0, %v324
    %v344 = vsel %vm340, 0.0, %v326
    %v345 = vsel %vm341, 0.0, %v328
    %v346 = vsel %vm342, 0.0, %v334
    %v347 = vld [vmem:[#allocation2] sm:$0xff]
    %v348 = vld [vmem:[#allocation2 + $0x8] sm:$0xff]
    %v349 = vld [vmem:[#allocation2 + $0x10] sm:$0xff]
    %v350 = vld [vmem:[#allocation2 + $0x18] sm:$0xff]
    %v351 = vld [vmem:[#allocation2 + $0x20] sm:$0xff]
    %v352 = vld [vmem:[#allocation2 + $0x28] sm:$0xff]
    %v353 = vld [vmem:[#allocation2 + $0x30] sm:$0xff]
    %v354 = vld [vmem:[#allocation2 + $0x38] sm:$0xff]
    %v355 = vld [vmem:[#allocation2 + $0x40] sm:$0xff]
    %v356 = vld [vmem:[#allocation2 + $0x48] sm:$0xff]
    %v357 = vld [vmem:[#allocation2 + $0x50] sm:$0xff]
    %v358 = vld [vmem:[#allocation2 + $0x58] sm:$0xff]
    %v359 = vld [vmem:[#allocation2 + $0x60] sm:$0xff]
    %v360 = vld [vmem:[#allocation2 + $0x68] sm:$0xff]
    %v361 = vld [vmem:[#allocation2 + $0x70] sm:$0xff]
    %v362 = vld [vmem:[#allocation2 + $0x78] sm:$0xff]
    %s363 = scalar_lea.vmem [#allocation2], 128
    %v364 = vld [vmem:[%s363] sm:$0xff]
    %v365 = vld [vmem:[%s363 + $0x8] sm:$0xff]
    %v366 = vld [vmem:[%s363 + $0x10] sm:$0xff]
    %v367 = vld [vmem:[%s363 + $0x18] sm:$0xff]
    %v368 = vld [vmem:[%s363 + $0x20] sm:$0xff]
    %v369 = vld [vmem:[%s363 + $0x28] sm:$0xff]
    %v370 = vld [vmem:[%s363 + $0x30] sm:$0xff]
    %v371 = vld [vmem:[%s363 + $0x38] sm:$0xff]
    %v372 = vld [vmem:[%s363 + $0x40] sm:$0xff]
    %v373 = vld [vmem:[%s363 + $0x48] sm:$0xff]
    %v374 = vld [vmem:[%s363 + $0x50] sm:$0xff]
    %v375 = vld [vmem:[%s363 + $0x58] sm:$0xff]
    %v376 = vld [vmem:[%s363 + $0x60] sm:$0xff]
    %v377 = vld [vmem:[%s363 + $0x68] sm:$0xff]
    %v378 = vld [vmem:[%s363 + $0x70] sm:$0xff]
    %v379 = vld [vmem:[%s363 + $0x78] sm:$0xff]
    %380 = vmatprep.subr.mxu0 0.0
    %381 = vmatpush1.msra.mxu0 %v364
    %382 = vmatprep.subr.mxu0 0.0
    %383 = vmatpush1.msra.mxu0 %v365
    %384 = vmatprep.subr.mxu0 0.0
    %385 = vmatpush1.msra.mxu0 %v366
    %386 = vmatprep.subr.mxu0 0.0
    %387 = vmatpush1.msra.mxu0 %v367
    %388 = vmatprep.subr.mxu0 0.0
    %389 = vmatpush1.msra.mxu0 %v368
    %390 = vmatprep.subr.mxu0 0.0
    %391 = vmatpush1.msra.mxu0 %v369
    %392 = vmatprep.subr.mxu0 0.0
    %393 = vmatpush1.msra.mxu0 %v370
    %394 = vmatprep.subr.mxu0 0.0
    %395 = vmatpush1.msra.mxu0 %v371
    %396 = vmatprep.subr.mxu0 0.0
    %397 = vmatpush1.msra.mxu0 %v372
    %398 = vmatprep.subr.mxu0 0.0
    %399 = vmatpush1.msra.mxu0 %v373
    %400 = vmatprep.subr.mxu0 0.0
    %401 = vmatpush1.msra.mxu0 %v374
    %402 = vmatprep.subr.mxu0 0.0
    %403 = vmatpush1.msra.mxu0 %v375
    %404 = vmatprep.subr.mxu0 0.0
    %405 = vmatpush1.msra.mxu0 %v376
    %406 = vmatprep.subr.mxu0 0.0
    %407 = vmatpush1.msra.mxu0 %v377
    %408 = vmatprep.subr.mxu0 0.0
    %409 = vmatpush1.msra.mxu0 %v378
    %410 = vmatprep.subr.mxu0 0.0
    %411 = vmatpush1.msra.mxu0 %v379
    %412 = vmatprep.subr.mxu0 0.0
    %413 = vmatpush1.msra.mxu0 0.0
    %414 = vmatprep.subr.mxu0 0.0
    %415 = vmatpush1.msra.mxu0 0.0
    %416 = vmatprep.subr.mxu0 0.0
    %417 = vmatpush1.msra.mxu0 0.0
    %418 = vmatprep.subr.mxu0 0.0
    %419 = vmatpush1.msra.mxu0 0.0
    %420 = vmatprep.subr.mxu0 0.0
    %421 = vmatpush1.msra.mxu0 0.0
    %422 = vmatprep.subr.mxu0 0.0
    %423 = vmatpush1.msra.mxu0 0.0
    %424 = vmatprep.subr.mxu0 0.0
    %425 = vmatpush1.msra.mxu0 0.0
    %426 = vmatprep.subr.mxu0 0.0
    %427 = vmatpush1.msra.mxu0 0.0
    %428 = vmatprep.subr.mxu0 0.0
    %429 = vmatpush1.msra.mxu0 0.0
    %430 = vmatprep.subr.mxu0 0.0
    %431 = vmatpush1.msra.mxu0 0.0
    %432 = vmatprep.subr.mxu0 0.0
    %433 = vmatpush1.msra.mxu0 0.0
    %434 = vmatprep.subr.mxu0 0.0
    %435 = vmatpush1.msra.mxu0 0.0
    %436 = vmatprep.subr.mxu0 0.0
    %437 = vmatpush1.msra.mxu0 0.0
    %438 = vmatprep.subr.mxu0 0.0
    %439 = vmatpush1.msra.mxu0 0.0
    %440 = vmatprep.subr.mxu0 0.0
    %441 = vmatpush1.msra.mxu0 0.0
    %442 = vmatprep.subr.mxu0 0.0
    %443 = vmatpush1.msra.mxu0 0.0
    %444 = vmatprep.mubr.f32.mxu0 0.0
    %445 = vmatmul.mubr.f32.gmra.mrb[0].mxu0 %v287
    %v446 = vpop.f32.mrb[0].mxu0
    %v447 = vadd.f32 0.0, %v446
    %v448 = vpop.f32.mrb[0].mxu0
    %449 = vmatprep.mubr.f32.mxu0 0.0
    %450 = vmatmul.mubr.f32.gmra.mrb[0].mxu0 %v288
    %v451 = vpop.f32.mrb[0].mxu0
    %v452 = vadd.f32 0.0, %v451
    %v453 = vpop.f32.mrb[0].mxu0
    %454 = vmatprep.mubr.f32.mxu0 0.0
    %455 = vmatmul.mubr.f32.gmra.mrb[0].mxu0 %v289
    %v456 = vpop.f32.mrb[0].mxu0
    %v457 = vadd.f32 0.0, %v456
    %v458 = vpop.f32.mrb[0].mxu0
    %459 = vmatprep.mubr.f32.mxu0 0.0
    %460 = vmatmul.mubr.f32.gmra.mrb[0].mxu0 %v290
    %v461 = vpop.f32.mrb[0].mxu0
    %v462 = vadd.f32 0.0, %v461
    %v463 = vpop.f32.mrb[0].mxu0
    %464 = vdwg.mxu0
    %465 = vmatprep.subr.mxu0 0.0
    %466 = vmatpush1.msra.mxu0 %v347
    %467 = vmatprep.subr.mxu0 0.0
    %468 = vmatpush1.msra.mxu0 %v348
    %469 = vmatprep.subr.mxu0 0.0
    %470 = vmatpush1.msra.mxu0 %v349
    %471 = vmatprep.subr.mxu0 0.0
    %472 = vmatpush1.msra.mxu0 %v350
    %473 = vmatprep.subr.mxu0 0.0
    %474 = vmatpush1.msra.mxu0 %v351
    %475 = vmatprep.subr.mxu0 0.0
    %476 = vmatpush1.msra.mxu0 %v352
    %477 = vmatprep.subr.mxu0 0.0
    %478 = vmatpush1.msra.mxu0 %v353
    %479 = vmatprep.subr.mxu0 0.0
    %480 = vmatpush1.msra.mxu0 %v354
    %481 = vmatprep.subr.mxu0 0.0
    %482 = vmatpush1.msra.mxu0 %v355
    %483 = vmatprep.subr.mxu0 0.0
    %484 = vmatpush1.msra.mxu0 %v356
    %485 = vmatprep.subr.mxu0 0.0
    %486 = vmatpush1.msra.mxu0 %v357
    %487 = vmatprep.subr.mxu0 0.0
    %488 = vmatpush1.msra.mxu0 %v358
    %489 = vmatprep.subr.mxu0 0.0
    %490 = vmatpush1.msra.mxu0 %v359
    %491 = vmatprep.subr.mxu0 0.0
    %492 = vmatpush1.msra.mxu0 %v360
    %493 = vmatprep.subr.mxu0 0.0
    %494 = vmatpush1.msra.mxu0 %v361
    %495 = vmatprep.subr.mxu0 0.0
    %496 = vmatpush1.msra.mxu0 %v362
    %497 = vmatprep.subr.mxu0 0.0
    %498 = vmatpush1.msra.mxu0 0.0
    %499 = vmatprep.subr.mxu0 0.0
    %500 = vmatpush1.msra.mxu0 0.0
    %501 = vmatprep.subr.mxu0 0.0
    %502 = vmatpush1.msra.mxu0 0.0
    %503 = vmatprep.subr.mxu0 0.0
    %504 = vmatpush1.msra.mxu0 0.0
    %505 = vmatprep.subr.mxu0 0.0
    %506 = vmatpush1.msra.mxu0 0.0
    %507 = vmatprep.subr.mxu0 0.0
    %508 = vmatpush1.msra.mxu0 0.0
    %509 = vmatprep.subr.mxu0 0.0
    %510 = vmatpush1.msra.mxu0 0.0
    %511 = vmatprep.subr.mxu0 0.0
    %512 = vmatpush1.msra.mxu0 0.0
    %513 = vmatprep.subr.mxu0 0.0
    %514 = vmatpush1.msra.mxu0 0.0
    %515 = vmatprep.subr.mxu0 0.0
    %516 = vmatpush1.msra.mxu0 0.0
    %517 = vmatprep.subr.mxu0 0.0
    %518 = vmatpush1.msra.mxu0 0.0
    %519 = vmatprep.subr.mxu0 0.0
    %520 = vmatpush1.msra.mxu0 0.0
    %521 = vmatprep.subr.mxu0 0.0
    %522 = vmatpush1.msra.mxu0 0.0
    %523 = vmatprep.subr.mxu0 0.0
    %524 = vmatpush1.msra.mxu0 0.0
    %525 = vmatprep.subr.mxu0 0.0
    %526 = vmatpush1.msra.mxu0 0.0
    %527 = vmatprep.subr.mxu0 0.0
    %528 = vmatpush1.msra.mxu0 0.0
    %529 = vmatprep.mubr.f32.mxu0 0.0
    %530 = vmatmul.mubr.f32.gmra.mrb[0].mxu0 %v317
    %v531 = vpop.f32.mrb[0].mxu0
    %v532 = vadd.f32 %v447, %v531
    %v533 = vpop.f32.mrb[0].mxu0
    %534 = vmatprep.mubr.f32.mxu0 0.0
    %535 = vmatmul.mubr.f32.gmra.mrb[0].mxu0 %v318
    %v536 = vpop.f32.mrb[0].mxu0
    %v537 = vadd.f32 %v452, %v536
    %v538 = vpop.f32.mrb[0].mxu0
    %539 = vmatprep.mubr.f32.mxu0 0.0
    %540 = vmatmul.mubr.f32.gmra.mrb[0].mxu0 %v319
    %v541 = vpop.f32.mrb[0].mxu0
    %v542 = vadd.f32 %v457, %v541
    %v543 = vpop.f32.mrb[0].mxu0
    %544 = vmatprep.mubr.f32.mxu0 0.0
    %545 = vmatmul.mubr.f32.gmra.mrb[0].mxu0 %v320
    %v546 = vpop.f32.mrb[0].mxu0
    %v547 = vadd.f32 %v462, %v546
    %v548 = vpop.f32.mrb[0].mxu0
    %549 = vdwg.mxu0
    %s550 = scalar_lea.vmem [#allocation2], 256
    %v551 = vld [vmem:[%s550] sm:$0xff]
    %v552 = vld [vmem:[%s550 + $0x8] sm:$0xff]
    %v553 = vld [vmem:[%s550 + $0x10] sm:$0xff]
    %v554 = vld [vmem:[%s550 + $0x18] sm:$0xff]
    %v555 = vld [vmem:[%s550 + $0x20] sm:$0xff]
    %v556 = vld [vmem:[%s550 + $0x28] sm:$0xff]
    %v557 = vld [vmem:[%s550 + $0x30] sm:$0xff]
    %v558 = vld [vmem:[%s550 + $0x38] sm:$0xff]
    %v559 = vld [vmem:[%s550 + $0x40] sm:$0xff]
    %v560 = vld [vmem:[%s550 + $0x48] sm:$0xff]
    %v561 = vld [vmem:[%s550 + $0x50] sm:$0xff]
    %v562 = vld [vmem:[%s550 + $0x58] sm:$0xff]
    %v563 = vld [vmem:[%s550 + $0x60] sm:$0xff]
    %v564 = vld [vmem:[%s550 + $0x68] sm:$0xff]
    %v565 = vld [vmem:[%s550 + $0x70] sm:$0xff]
    %v566 = vld [vmem:[%s550 + $0x78] sm:$0xff]
    %567 = vmatprep.subr.mxu0 0.0
    %568 = vmatpush1.msra.mxu0 %v551
    %569 = vmatprep.subr.mxu0 0.0
    %570 = vmatpush1.msra.mxu0 %v552
    %571 = vmatprep.subr.mxu0 0.0
    %572 = vmatpush1.msra.mxu0 %v553
    %573 = vmatprep.subr.mxu0 0.0
    %574 = vmatpush1.msra.mxu0 %v554
    %575 = vmatprep.subr.mxu0 0.0
    %576 = vmatpush1.msra.mxu0 %v555
    %577 = vmatprep.subr.mxu0 0.0
    %578 = vmatpush1.msra.mxu0 %v556
    %579 = vmatprep.subr.mxu0 0.0
    %580 = vmatpush1.msra.mxu0 %v557
    %581 = vmatprep.subr.mxu0 0.0
    %582 = vmatpush1.msra.mxu0 %v558
    %583 = vmatprep.subr.mxu0 0.0
    %584 = vmatpush1.msra.mxu0 %v559
    %585 = vmatprep.subr.mxu0 0.0
    %586 = vmatpush1.msra.mxu0 %v560
    %587 = vmatprep.subr.mxu0 0.0
    %588 = vmatpush1.msra.mxu0 %v561
    %589 = vmatprep.subr.mxu0 0.0
    %590 = vmatpush1.msra.mxu0 %v562
    %591 = vmatprep.subr.mxu0 0.0
    %592 = vmatpush1.msra.mxu0 %v563
    %593 = vmatprep.subr.mxu0 0.0
    %594 = vmatpush1.msra.mxu0 %v564
    %595 = vmatprep.subr.mxu0 0.0
    %596 = vmatpush1.msra.mxu0 %v565
    %597 = vmatprep.subr.mxu0 0.0
    %598 = vmatpush1.msra.mxu0 %v566
    %599 = vmatprep.subr.mxu0 0.0
    %600 = vmatpush1.msra.mxu0 0.0
    %601 = vmatprep.subr.mxu0 0.0
    %602 = vmatpush1.msra.mxu0 0.0
    %603 = vmatprep.subr.mxu0 0.0
    %604 = vmatpush1.msra.mxu0 0.0
    %605 = vmatprep.subr.mxu0 0.0
    %606 = vmatpush1.msra.mxu0 0.0
    %607 = vmatprep.subr.mxu0 0.0
    %608 = vmatpush1.msra.mxu0 0.0
    %609 = vmatprep.subr.mxu0 0.0
    %610 = vmatpush1.msra.mxu0 0.0
    %611 = vmatprep.subr.mxu0 0.0
    %612 = vmatpush1.msra.mxu0 0.0
    %613 = vmatprep.subr.mxu0 0.0
    %614 = vmatpush1.msra.mxu0 0.0
    %615 = vmatprep.subr.mxu0 0.0
    %616 = vmatpush1.msra.mxu0 0.0
    %617 = vmatprep.subr.mxu0 0.0
    %618 = vmatpush1.msra.mxu0 0.0
    %619 = vmatprep.subr.mxu0 0.0
    %620 = vmatpush1.msra.mxu0 0.0
    %621 = vmatprep.subr.mxu0 0.0
    %622 = vmatpush1.msra.mxu0 0.0
    %623 = vmatprep.subr.mxu0 0.0
    %624 = vmatpush1.msra.mxu0 0.0
    %625 = vmatprep.subr.mxu0 0.0
    %626 = vmatpush1.msra.mxu0 0.0
    %627 = vmatprep.subr.mxu0 0.0
    %628 = vmatpush1.msra.mxu0 0.0
    %629 = vmatprep.subr.mxu0 0.0
    %630 = vmatpush1.msra.mxu0 0.0
    %631 = vmatprep.mubr.f32.mxu0 0.0
    %632 = vmatmul.mubr.f32.gmra.mrb[0].mxu0 %v343
    %v633 = vpop.f32.mrb[0].mxu0
    %v634 = vadd.f32 0.0, %v633
    %v635 = vpop.f32.mrb[0].mxu0
    %636 = vmatprep.mubr.f32.mxu0 0.0
    %637 = vmatmul.mubr.f32.gmra.mrb[0].mxu0 %v344
    %v638 = vpop.f32.mrb[0].mxu0
    %v639 = vadd.f32 0.0, %v638
    %v640 = vpop.f32.mrb[0].mxu0
    %641 = vmatprep.mubr.f32.mxu0 0.0
    %642 = vmatmul.mubr.f32.gmra.mrb[0].mxu0 %v345
    %v643 = vpop.f32.mrb[0].mxu0
    %v644 = vadd.f32 0.0, %v643
    %v645 = vpop.f32.mrb[0].mxu0
    %646 = vmatprep.mubr.f32.mxu0 0.0
    %647 = vmatmul.mubr.f32.gmra.mrb[0].mxu0 %v346
    %v648 = vpop.f32.mrb[0].mxu0
    %v649 = vadd.f32 0.0, %v648
    %v650 = vpop.f32.mrb[0].mxu0
    %651 = vdwg.mxu0
    %v652 = vadd.f32 %v532, %v634
    %v653 = vadd.f32 %v537, %v639
    %v654 = vadd.f32 %v542, %v644
    %v655 = vadd.f32 %v547, %v649
    %v656 = vlaneseq
    %v657 = vshrl.u32 %v656, 7
    %v658 = vsub.s32 0, %v657
    %v659 = vrot.slane %v116, %v658
    %v660 = vadd.f32 %v652, %v659
    %v661 = vadd.f32 %v653, %v659
    %v662 = vadd.f32 %v654, %v659
    %v663 = vadd.f32 %v655, %v659
    %v664 = vmax.f32 %v660, 0.0
    %v665 = vmax.f32 %v661, 0.0
    %v666 = vmax.f32 %v662, 0.0
    %v667 = vmax.f32 %v663, 0.0
    %668 = vadd.xlane.f32.xlu0 %v664
    %v669 = vpop.xlane.xlu0 %668
    %670 = vadd.xlane.f32.xlu0 %v665
    %v671 = vpop.xlane.xlu0 %670
    %672 = vadd.xlane.f32.xlu0 %v666
    %v673 = vpop.xlane.xlu0 %672
    %674 = vadd.xlane.f32.xlu0 %v667
    %v675 = vpop.xlane.xlu0 %674
    %v676 = vmul.f32 %v669, %v238
    %v677 = vmul.f32 %v671, %v238
    %v678 = vmul.f32 %v673, %v238
    %v679 = vmul.f32 %v675, %v238
    %v680 = vsub.f32 %v664, %v676
    %v681 = vsub.f32 %v665, %v677
    %v682 = vsub.f32 %v666, %v678
    %v683 = vsub.f32 %v667, %v679
    %v684 = vmul.f32 %v680, %v680
    %v685 = vmul.f32 %v681, %v681
    %v686 = vmul.f32 %v682, %v682
    %v687 = vmul.f32 %v683, %v683
    %688 = vadd.xlane.f32.xlu0 %v684
    %v689 = vpop.xlane.xlu0 %688
    %690 = vadd.xlane.f32.xlu0 %v685
    %v691 = vpop.xlane.xlu0 %690
    %692 = vadd.xlane.f32.xlu0 %v686
    %v693 = vpop.xlane.xlu0 %692
    %694 = vadd.xlane.f32.xlu0 %v687
    %v695 = vpop.xlane.xlu0 %694
    %v696 = vmul.f32 %v689, %v238
    %v697 = vmul.f32 %v691, %v238
    %v698 = vmul.f32 %v693, %v238
    %v699 = vmul.f32 %v695, %v238
    %v700 = vadd.f32 %v696, 1e-05
    %v701 = vadd.f32 %v697, 1e-05
    %v702 = vadd.f32 %v698, 1e-05
    %v703 = vadd.f32 %v699, 1e-05
    %v704 = vrsqrt.pop %v700
    %v705 = vrsqrt.pop %v701
    %v706 = vrsqrt.pop %v702
    %v707 = vrsqrt.pop %v703
    %v708 = vmul.f32 %v680, %v704
    %v709 = vmul.f32 %v681, %v705
    %v710 = vmul.f32 %v682, %v706
    %v711 = vmul.f32 %v683, %v707
    %v712 = vld [vmem:[#allocation5] sm:$0xff]
    %v713 = vld [vmem:[#allocation5 + $0x8] sm:$0xff]
    %v714 = vld [vmem:[#allocation5 + $0x10] sm:$0xff]
    %v715 = vld [vmem:[#allocation5 + $0x18] sm:$0xff]
    %v716 = vld [vmem:[#allocation5 + $0x20] sm:$0xff]
    %v717 = vld [vmem:[#allocation5 + $0x28] sm:$0xff]
    %v718 = vld [vmem:[#allocation5 + $0x30] sm:$0xff]
    %v719 = vld [vmem:[#allocation5 + $0x38] sm:$0xff]
    %v720 = vld [vmem:[#allocation5 + $0x40] sm:$0xff]
    %v721 = vld [vmem:[#allocation5 + $0x48] sm:$0xff]
    %v722 = vld [vmem:[#allocation5 + $0x50] sm:$0xff]
    %v723 = vld [vmem:[#allocation5 + $0x58] sm:$0xff]
    %v724 = vld [vmem:[#allocation5 + $0x60] sm:$0xff]
    %v725 = vld [vmem:[#allocation5 + $0x68] sm:$0xff]
    %v726 = vld [vmem:[#allocation5 + $0x70] sm:$0xff]
    %v727 = vld [vmem:[#allocation5 + $0x78] sm:$0xff]
    %v728 = vld [vmem:[%s5] sm:$0x1]
    %v730 = vlaneseq
    %v731 = vshrl.u32 %v730, 7
    %v732 = vsub.s32 0, %v731
    %v733 = vrot.slane %v728, %v732
    %735 = vmatprep.subr.mxu0 0.0
    %736 = vmatpush1.msra.mxu0 %v712
    %737 = vmatprep.subr.mxu0 0.0
    %738 = vmatpush1.msra.mxu0 %v713
    %739 = vmatprep.subr.mxu0 0.0
    %740 = vmatpush1.msra.mxu0 %v714
    %741 = vmatprep.subr.mxu0 0.0
    %742 = vmatpush1.msra.mxu0 %v715
    %743 = vmatprep.subr.mxu0 0.0
    %744 = vmatpush1.msra.mxu0 %v716
    %745 = vmatprep.subr.mxu0 0.0
    %746 = vmatpush1.msra.mxu0 %v717
    %747 = vmatprep.subr.mxu0 0.0
    %748 = vmatpush1.msra.mxu0 %v718
    %749 = vmatprep.subr.mxu0 0.0
    %750 = vmatpush1.msra.mxu0 %v719
    %751 = vmatprep.subr.mxu0 0.0
    %752 = vmatpush1.msra.mxu0 %v720
    %753 = vmatprep.subr.mxu0 0.0
    %754 = vmatpush1.msra.mxu0 %v721
    %755 = vmatprep.subr.mxu0 0.0
    %756 = vmatpush1.msra.mxu0 %v722
    %757 = vmatprep.subr.mxu0 0.0
    %758 = vmatpush1.msra.mxu0 %v723
    %759 = vmatprep.subr.mxu0 0.0
    %760 = vmatpush1.msra.mxu0 %v724
    %761 = vmatprep.subr.mxu0 0.0
    %762 = vmatpush1.msra.mxu0 %v725
    %763 = vmatprep.subr.mxu0 0.0
    %764 = vmatpush1.msra.mxu0 %v726
    %765 = vmatprep.subr.mxu0 0.0
    %766 = vmatpush1.msra.mxu0 %v727
    %767 = vmatprep.subr.mxu0 0.0
    %768 = vmatpush1.msra.mxu0 0.0
    %769 = vmatprep.subr.mxu0 0.0
    %770 = vmatpush1.msra.mxu0 0.0
    %771 = vmatprep.subr.mxu0 0.0
    %772 = vmatpush1.msra.mxu0 0.0
    %773 = vmatprep.subr.mxu0 0.0
    %774 = vmatpush1.msra.mxu0 0.0
    %775 = vmatprep.subr.mxu0 0.0
    %776 = vmatpush1.msra.mxu0 0.0
    %777 = vmatprep.subr.mxu0 0.0
    %778 = vmatpush1.msra.mxu0 0.0
    %779 = vmatprep.subr.mxu0 0.0
    %780 = vmatpush1.msra.mxu0 0.0
    %781 = vmatprep.subr.mxu0 0.0
    %782 = vmatpush1.msra.mxu0 0.0
    %783 = vmatprep.subr.mxu0 0.0
    %784 = vmatpush1.msra.mxu0 0.0
    %785 = vmatprep.subr.mxu0 0.0
    %786 = vmatpush1.msra.mxu0 0.0
    %787 = vmatprep.subr.mxu0 0.0
    %788 = vmatpush1.msra.mxu0 0.0
    %789 = vmatprep.subr.mxu0 0.0
    %790 = vmatpush1.msra.mxu0 0.0
    %791 = vmatprep.subr.mxu0 0.0
    %792 = vmatpush1.msra.mxu0 0.0
    %793 = vmatprep.subr.mxu0 0.0
    %794 = vmatpush1.msra.mxu0 0.0
    %795 = vmatprep.subr.mxu0 0.0
    %796 = vmatpush1.msra.mxu0 0.0
    %797 = vmatprep.subr.mxu0 0.0
    %798 = vmatpush1.msra.mxu0 0.0
    %799 = vmatprep.mubr.f32.mxu0 0.0
    %800 = vmatmul.mubr.f32.gmra.mrb[0].mxu0 %v708
    %v801 = vpop.f32.mrb[0].mxu0
    %v802 = vadd.f32 %v733, %v801
    %v803 = vpop.f32.mrb[0].mxu0
    %804 = vmatprep.mubr.f32.mxu0 0.0
    %805 = vmatmul.mubr.f32.gmra.mrb[0].mxu0 %v709
    %v806 = vpop.f32.mrb[0].mxu0
    %v807 = vadd.f32 %v733, %v806
    %v808 = vpop.f32.mrb[0].mxu0
    %809 = vmatprep.mubr.f32.mxu0 0.0
    %810 = vmatmul.mubr.f32.gmra.mrb[0].mxu0 %v710
    %v811 = vpop.f32.mrb[0].mxu0
    %v812 = vadd.f32 %v733, %v811
    %v813 = vpop.f32.mrb[0].mxu0
    %814 = vmatprep.mubr.f32.mxu0 0.0
    %815 = vmatmul.mubr.f32.gmra.mrb[0].mxu0 %v711
    %v816 = vpop.f32.mrb[0].mxu0
    %v817 = vadd.f32 %v733, %v816
    %v818 = vpop.f32.mrb[0].mxu0
    %819 = vdwg.mxu0
    %v820 = vpack.c.bf16 %v807, %v802
    %v821 = vpack.c.bf16 %v817, %v812
    %v824 = vunpack.c.l.b16 %v820
    %v825 = vunpack.c.h.b16 %v820
    %v826 = vunpack.c.l.b16 %v821
    %v827 = vunpack.c.h.b16 %v821
    %v828 = vpack.c.b16 %v824, %v824
    %v829 = vpack.c.b16 %v825, %v825
    %v830 = vpack.c.b16 %v826, %v826
    %v831 = vpack.c.b16 %v827, %v827
    %836 = vst [vmem:[#allocation7] sm:$0xf] %v828
    %837 = vst [vmem:[#allocation7 + $0x4] sm:$0xf] %v829
    %838 = vst [vmem:[#allocation7 + $0x8] sm:$0xf] %v830
    %839 = vst [vmem:[#allocation7 + $0xc] sm:$0xf] %v831
    // Predicated region
    $region34: #{tpu_custom_call.1} parent=1 // pred_check
      _
    $region35: #{tpu_custom_call.1} parent=1 // pred_check_branch
      %841 = sbr.rel (0) target = $region37
    $region36: #{tpu_custom_call.1} parent=1 // pred_region
      %s843 = ssub.s32 256, 256
      %844 = vsyncadd [#allocation4], %s843
      %s845 = sshll.u32 [#allocation7], 4
      %s846 = int_to_ptr.vmem [resolvable:$true] %s845
      %851 = dma.vmem_to_hbm [thread:$0]  %s846, 256, %s6, [#allocation4], 64, 64, 4
    $region37: #{tpu_custom_call.1} parent=1 // pred_fallthru
      _
    // Predicated region
    $region38: #{tpu_custom_call.1} parent=1 // pred_check
      _
    $region39: #{tpu_custom_call.1} parent=1 // pred_check_branch
      %853 = sbr.rel (0) target = $region41
    $region40: #{tpu_custom_call.1} parent=1 // pred_region
      %854 = dma.done [#allocation4], 256
    $region41: #{tpu_custom_call.1} parent=1 // pred_fallthru
      _
    %855 = vsyncpa [#allocation3], 1
    %856 = vsyncpa [#allocation6], 1
    %857 = vsyncpa [#allocation4], 1

</llo_original>
